<compile_context>
chip_gen: v6e
topology: v6e:2x2x1
jax: 0.10.0
libtpu: 0.0.40
codegen_flags: <defaults>
</compile_context>

<pallas_src>
import jax
import jax.numpy as jnp
from jax.experimental import pallas as pl
from jax.experimental.pallas import tpu as pltpu


_LANE = 128
_VMEM_LIMIT = 32 * 1024 * 1024  # explicit scoped-VMEM budget (well above what the
                                # double-buffered tiles need, still safe on v7x)


def _round_up(x, m):
    return ((x + m - 1) // m) * m


def _pad2(a, shape):
    """Zero-pad a 2-D array up to `shape` (trailing pad on each axis)."""
    return jnp.pad(a, [(0, s - d) for d, s in zip(a.shape, shape)])


# --------------------------------------------------------------------------
# Kernel 1: fused MoCo hot path (both encoders + normalize + l_pos/l_neg)
# --------------------------------------------------------------------------
def _fused_moco_kernel(inv_t_ref, x_ref, w1_ref, b1_ref, w2_ref, b2_ref, mem_ref,
                       feats_q_ref, logits_q_ref, logits_k_ref,
                       q_ref, k_ref, l_pos_ref, l_neg_ref,
                       feats_acc):
    """Grid: (F_pad // TK,) — reduction over the flattened-image axis.

    The leading axis (size 2) of x / w1 / b1 / w2 / b2 selects the encoder:
    0 = query (src) encoder, 1 = key (momentum) encoder.
    """
    kt = pl.program_id(0)

    @pl.when(kt == 0)
    def _():
        feats_acc[...] = jnp.zeros_like(feats_acc)

    # (2, B, TK) @ (2, TK, Dp) -> (2, B, Dp): bf16 MXU inputs, f32 accumulation.
    feats_acc[...] += jax.lax.dot_general(
        x_ref[...], w1_ref[...],
        dimension_numbers=(((2,), (1,)), ((0,), (0,))),
        preferred_element_type=jnp.float32)

    @pl.when(kt == pl.num_programs(0) - 1)
    def _():
        eps = 1e-12
        inv_t = inv_t_ref[0]

        feats = feats_acc[...] + b1_ref[...]                         # (2, B, Dp) f32
        feats_q = feats[0]
        feats_k = feats[1]
        feats_q_ref[...] = feats_q

        logits = jax.lax.dot_general(
            feats.astype(jnp.bfloat16), w2_ref[...],
            dimension_numbers=(((2,), (1,)), ((0,), (0,))),
            preferred_element_type=jnp.float32) + b2_ref[...]        # (2, B, Cp)
        logits_q_ref[...] = logits[0]
        logits_k_ref[...] = logits[1]

        # F.normalize(., dim=1): x / max(||x||, eps) == x * rsqrt(max(||x||^2, eps^2))
        q = feats_q * jax.lax.rsqrt(
            jnp.maximum(jnp.sum(feats_q * feats_q, axis=1, keepdims=True), eps * eps))
        k = feats_k * jax.lax.rsqrt(
            jnp.maximum(jnp.sum(feats_k * feats_k, axis=1, keepdims=True), eps * eps))
        q_ref[...] = q
        k_ref[...] = k

        # l_pos / l_neg already temperature-scaled; concatenated in the wrapper so
        # every wide store stays lane-dense (no masked 65-wide store / in-kernel concat).
        l_pos_ref[...] = jnp.sum(q * k, axis=1, keepdims=True) * inv_t
        l_neg_ref[...] = jnp.dot(q.astype(jnp.bfloat16), mem_ref[...],
                                 preferred_element_type=jnp.float32) * inv_t


def fused_moco_forward(x, w1, b1, w2, b2, mem, inv_t, *, tk):
    """x:(2,B,F_pad) bf16, w1:(2,F_pad,Dp) bf16, b1:(2,1,Dp) f32,
       w2:(2,Dp,Cp) bf16, b2:(2,1,Cp) f32, mem:(Dp,Kp) bf16, inv_t:(1,) f32."""
    _, B, F = x.shape
    Dp = w1.shape[2]
    Cp = w2.shape[2]
    Kp = mem.shape[1]
    n_kt = F // tk

    grid_spec = pltpu.PrefetchScalarGridSpec(
        num_scalar_prefetch=0,
        grid=(n_kt,),
        in_specs=[
            pl.BlockSpec(memory_space=pltpu.MemorySpace.SMEM),   # 1/T (traced scalar)
            pl.BlockSpec((2, B, tk), lambda kt: (0, 0, kt)),     # x   (pipelined over F)
            pl.BlockSpec((2, tk, Dp), lambda kt: (0, kt, 0)),    # w1  (pipelined over F)
            pl.BlockSpec((2, 1, Dp), lambda kt: (0, 0, 0)),      # b1  (resident)
            pl.BlockSpec((2, Dp, Cp), lambda kt: (0, 0, 0)),     # w2  (resident)
            pl.BlockSpec((2, 1, Cp), lambda kt: (0, 0, 0)),      # b2  (resident)
            pl.BlockSpec((Dp, Kp), lambda kt: (0, 0)),           # mem bank (resident)
        ],
        out_specs=(
            pl.BlockSpec((B, Dp), lambda kt: (0, 0)),            # feats_q
            pl.BlockSpec((B, Cp), lambda kt: (0, 0)),            # logits_q
            pl.BlockSpec((B, Cp), lambda kt: (0, 0)),            # logits_k
            pl.BlockSpec((B, Dp), lambda kt: (0, 0)),            # q (normalized)
            pl.BlockSpec((B, Dp), lambda kt: (0, 0)),            # k (normalized)
            pl.BlockSpec((B, 1), lambda kt: (0, 0)),             # l_pos / T
            pl.BlockSpec((B, Kp), lambda kt: (0, 0)),            # l_neg / T
        ),
        scratch_shapes=[pltpu.VMEM((2, B, Dp), jnp.float32)],
    )
    out_shape = (
        jax.ShapeDtypeStruct((B, Dp), jnp.float32),
        jax.ShapeDtypeStruct((B, Cp), jnp.float32),
        jax.ShapeDtypeStruct((B, Cp), jnp.float32),
        jax.ShapeDtypeStruct((B, Dp), jnp.float32),
        jax.ShapeDtypeStruct((B, Dp), jnp.float32),
        jax.ShapeDtypeStruct((B, 1), jnp.float32),
        jax.ShapeDtypeStruct((B, Kp), jnp.float32),
    )
    return pl.pallas_call(
        _fused_moco_kernel,
        out_shape=out_shape,
        grid_spec=grid_spec,
        compiler_params=pltpu.CompilerParams(
            dimension_semantics=("arbitrary",),          # reduction axis
            vmem_limit_bytes=_VMEM_LIMIT),
    )(inv_t, x, w1, b1, w2, b2, mem)


# --------------------------------------------------------------------------
# Kernel 2: encoder-only path (cls_only=True)
# --------------------------------------------------------------------------
def _encoder_kernel(x_ref, w1_ref, b1_ref, w2_ref, b2_ref,
                    feats_ref, logits_ref, acc_ref):
    kt = pl.program_id(0)

    @pl.when(kt == 0)
    def _():
        acc_ref[...] = jnp.zeros_like(acc_ref)

    acc_ref[...] += jnp.dot(x_ref[...], w1_ref[...],
                            preferred_element_type=jnp.float32)

    @pl.when(kt == pl.num_programs(0) - 1)
    def _():
        feats = acc_ref[...] + b1_ref[...]
        feats_ref[...] = feats
        logits_ref[...] = jnp.dot(feats.astype(jnp.bfloat16), w2_ref[...],
                                  preferred_element_type=jnp.float32) + b2_ref[...]


def encoder_forward(x, w1, b1, w2, b2, *, tk):
    """x:(B,F_pad) bf16, w1:(F_pad,Dp) bf16, b1:(1,Dp) f32, w2:(Dp,Cp) bf16, b2:(1,Cp) f32."""
    B, F = x.shape
    Dp = w1.shape[1]
    Cp = w2.shape[1]
    n_kt = F // tk
    return pl.pallas_call(
        _encoder_kernel,
        out_shape=(jax.ShapeDtypeStruct((B, Dp), jnp.float32),
                   jax.ShapeDtypeStruct((B, Cp), jnp.float32)),
        grid_spec=pltpu.PrefetchScalarGridSpec(
            num_scalar_prefetch=0,
            grid=(n_kt,),
            in_specs=[
                pl.BlockSpec((B, tk), lambda kt: (0, kt)),
                pl.BlockSpec((tk, Dp), lambda kt: (kt, 0)),
                pl.BlockSpec((1, Dp), lambda kt: (0, 0)),
                pl.BlockSpec((Dp, Cp), lambda kt: (0, 0)),
                pl.BlockSpec((1, Cp), lambda kt: (0, 0)),
            ],
            out_specs=(pl.BlockSpec((B, Dp), lambda kt: (0, 0)),
                       pl.BlockSpec((B, Cp), lambda kt: (0, 0))),
            scratch_shapes=[pltpu.VMEM((B, Dp), jnp.float32)],
        ),
        compiler_params=pltpu.CompilerParams(
            dimension_semantics=("arbitrary",),
            vmem_limit_bytes=_VMEM_LIMIT),
    )(x, w1, b1, w2, b2)


# --------------------------------------------------------------------------
# Kernel 3: l_neg_near = mem_feat^T @ mem_feat — depends only on the bank,
# computed once per bank update and cached (hoisted off the per-step path).
# Tiled over (K, K) with a fully parallel grid (both TCs on v7x).
# --------------------------------------------------------------------------
def _lnn_kernel(mem_i_ref, mem_j_ref, out_ref):
    out_ref[...] = jax.lax.dot_general(
        mem_i_ref[...], mem_j_ref[...],
        dimension_numbers=(((0,), (0,)), ((), ())),   # contract over D, no transpose
        preferred_element_type=jnp.float32)


def mem_self_similarity(mem_bf16):
    Dp, Kp = mem_bf16.shape
    tk = 256 if Kp % 256 == 0 else _LANE
    grid = (Kp // tk, Kp // tk)
    return pl.pallas_call(
        _lnn_kernel,
        out_shape=jax.ShapeDtypeStruct((Kp, Kp), jnp.float32),
        grid_spec=pltpu.PrefetchScalarGridSpec(
            num_scalar_prefetch=0,
            grid=grid,
            in_specs=[pl.BlockSpec((Dp, tk), lambda i, j: (0, i)),
                      pl.BlockSpec((Dp, tk), lambda i, j: (0, j))],
            out_specs=pl.BlockSpec((tk, tk), lambda i, j: (i, j)),
        ),
        compiler_params=pltpu.CompilerParams(
            dimension_semantics=("parallel", "parallel"),
            vmem_limit_bytes=_VMEM_LIMIT),
    )(mem_bf16, mem_bf16)


# --------------------------------------------------------------------------
# CNA_MoCo (forward-pass semantics) in JAX + Pallas
# --------------------------------------------------------------------------
class CNAMoCoPallas:
    def __init__(self, key, *, in_features, feature_dim=32, num_classes=10,
                 K=64, m=0.999, T_moco=0.07):
        self.K = K
        self.m = m
        self.T_moco = T_moco
        self.D = feature_dim
        self.C = num_classes

        # lane-aligned padded sizes (pad weights / bank once; slice outputs back)
        self.D_pad = _round_up(feature_dim, _LANE)
        self.C_pad = _round_up(num_classes, _LANE)
        self.K_pad = _round_up(K, _LANE)
        # Reduction tile: multiple of 128 (lane dim of x, sublane dim of w1),
        # capped at 512 so small inputs don't pad up to a full 512-wide tile.
        self.TK = min(512, _round_up(in_features, _LANE))
        self.F_in = in_features
        self.F_pad = _round_up(in_features, self.TK)

        ks = jax.random.split(key, 9)

        def init_encoder(k0, k1, k2, k3):
            w1 = 0.02 * jax.random.normal(k0, (in_features, feature_dim), jnp.float32)
            b1 = 0.02 * jax.random.normal(k1, (1, feature_dim), jnp.float32)
            w2 = 0.02 * jax.random.normal(k2, (feature_dim, num_classes), jnp.float32)
            b2 = 0.02 * jax.random.normal(k3, (1, num_classes), jnp.float32)
            return (_pad2(w1, (self.F_pad, self.D_pad)),
                    _pad2(b1, (1, self.D_pad)),
                    _pad2(w2, (self.D_pad, self.C_pad)),
                    _pad2(b2, (1, self.C_pad)))

        src = init_encoder(*ks[0:4])        # query encoder
        mom = init_encoder(*ks[4:8])        # key (momentum) encoder

        # f32 master weights, stacked: index 0 = src/query, index 1 = momentum/key.
        # (Kept in f32 so the m=0.999 EMA is not rounded away; cast to bf16 per call.)
        self.w1 = jnp.stack([src[0], mom[0]])   # (2, F_pad, D_pad)
        self.b1 = jnp.stack([src[1], mom[1]])   # (2, 1, D_pad)
        self.w2 = jnp.stack([src[2], mom[2]])   # (2, D_pad, C_pad)
        self.b2 = jnp.stack([src[3], mom[3]])   # (2, 1, C_pad)

        # register_buffer('mem_feat', randn(D, K)); mem_feat = normalize(mem_feat, dim=0)
        mem = jax.random.normal(ks[8], (feature_dim, K), jnp.float32)
        mem = mem / jnp.maximum(jnp.sqrt(jnp.sum(mem * mem, axis=0, keepdims=True)), 1e-12)
        self.mem_feat = _pad2(mem, (self.D_pad, self.K_pad))   # padded f32 master

        # cached mem^T @ mem (l_neg_near): depends only on mem_feat.
        # TODO(synk): update_memory / queue_ptr buffer mutation not implemented;
        # invalidate this cache (set to None) whenever the bank is updated.
        self._l_neg_near = None

    # ---- host-side glue ---------------------------------------------------
    def _flatten(self, im):
        B = im.shape[0]
        x = im.reshape(B, -1)
        if x.shape[1] != self.F_pad:
            x = jnp.pad(x, ((0, 0), (0, self.F_pad - x.shape[1])))
        return x.astype(jnp.bfloat16)

    def _momentum_update_key_encoder(self):
        # param_k = param_k * m + param_q * (1 - m)   (f32 masters, elementwise EMA)
        def ema(p):
            return p.at[1].set(p[1] * self.m + p[0] * (1.0 - self.m))
        self.w1, self.b1, self.w2, self.b2 = (
            ema(self.w1), ema(self.b1), ema(self.w2), ema(self.b2))

    # ---- forward ----------------------------------------------------------
    def forward(self, im_q, im_k=None, cls_only=False, prototypes_q=None,
                use_proto_loss_v2=False, shuffle_key=None):
        B = im_q.shape[0]
        D, C, K = self.D, self.C, self.K
        xq = self._flatten(im_q)

        if cls_only:
            feats_q_p, logits_q_p = encoder_forward(
                xq, self.w1[0].astype(jnp.bfloat16), self.b1[0],
                self.w2[0].astype(jnp.bfloat16), self.b2[0], tk=self.TK)
            return feats_q_p[:, :D], logits_q_p[:, :C]

        # ---- key branch (no_grad in torch) ----
        self._momentum_update_key_encoder()

        # TODO(synk): _batch_shuffle_ddp / _batch_unshuffle_ddp use DDP all-gather +
        # broadcast; modelled here as a single-chip batch permutation.  The row-wise
        # encoder commutes with it, so we skip the im_k / feats_k HBM gathers and only
        # permute logits_k rows to reproduce the PyTorch (shuffled-order) return value.
        if shuffle_key is None:
            shuffle_key = jax.random.PRNGKey(0)
        idx_shuffle = jax.random.permutation(shuffle_key, B)

        xk = self._flatten(im_k)
        x_stacked = jnp.stack([xq, xk], axis=0)                     # (2, B, F_pad)
        mem_bf16 = self.mem_feat.astype(jnp.bfloat16)
        inv_t = jnp.full((1,), 1.0 / self.T_moco, jnp.float32)      # traced scalar

        (feats_q_p, logits_q_p, logits_k_p, q_p, k_p, l_pos, l_neg_p) = fused_moco_forward(
            x_stacked,
            self.w1.astype(jnp.bfloat16), self.b1,
            self.w2.astype(jnp.bfloat16), self.b2,
            mem_bf16, inv_t, tk=self.TK)

        feats_q = feats_q_p[:, :D]
        logits_q = logits_q_p[:, :C]
        logits_k = logits_k_p[idx_shuffle][:, :C]   # PyTorch returns logits_k shuffled
        q = q_p[:, :D]
        k = k_p[:, :D]
        logits_ins = jnp.concatenate([l_pos, l_neg_p[:, :K]], axis=1)  # already / T

        # l_neg_near: hoisted out of the hot path, cached per bank state.
        if self._l_neg_near is None:
            self._l_neg_near = mem_self_similarity(mem_bf16)[:K, :K]
        l_neg_near = self._l_neg_near

        # ---- optional prototype loss (args.learn.use_proto_loss_v2) ----
        if use_proto_loss_v2:
            psuedo_label = jnp.argmax(logits_q, axis=1)                          # (B,)
            npq = prototypes_q * jax.lax.rsqrt(jnp.maximum(
                jnp.sum(prototypes_q * prototypes_q, axis=1, keepdims=True), 1e-24))
            select_pos = npq[psuedo_label]                                        # (B, D)
            l_pos_proto = jnp.sum(q * select_pos, axis=1, keepdims=True)          # (B, 1)
            l_neg_proto = q @ select_pos.T                                        # (B, B)
            proto_logits_ins = jnp.concatenate(
                [l_pos_proto, l_neg_proto], axis=1) / self.T_moco
            mask = jnp.concatenate(
                [jnp.ones((B, 1), dtype=bool),
                 psuedo_label[:, None] != psuedo_label[None, :]], axis=1)
            proto_logits_ins = jnp.where(mask, proto_logits_ins, -jnp.inf)
            # F.cross_entropy with labels == 0
            loss_proto = jnp.mean(
                jax.nn.logsumexp(proto_logits_ins, axis=1) - proto_logits_ins[:, 0])
        else:
            loss_proto = None

        return feats_q, logits_q, logits_ins, k, logits_k, l_neg_near, loss_proto


# --------------------------------------------------------------------------
if __name__ == "__main__":
    B, C_IN, H, W = 2, 4, 16, 16
    FEATURE_DIM, NUM_CLASSES, K_BANK = 32, 10, 64

    root = jax.random.PRNGKey(0)
    k_model, k_imq, k_imk, k_proto, k_shuf = jax.random.split(root, 5)

    model = CNAMoCoPallas(
        k_model, in_features=C_IN * H * W, feature_dim=FEATURE_DIM,
        num_classes=NUM_CLASSES, K=K_BANK, m=0.999, T_moco=0.07)

    im_q = jax.random.normal(k_imq, (B, C_IN, H, W), jnp.float32)
    im_k = jax.random.normal(k_imk, (B, C_IN, H, W), jnp.float32)
    prototypes_q = jax.random.normal(k_proto, (NUM_CLASSES, FEATURE_DIM), jnp.float32)

    # cls_only path (encoder-only kernel)
    f_cls, l_cls = model.forward(im_q, cls_only=True)
    jax.block_until_ready((f_cls, l_cls))
    assert f_cls.shape == (B, FEATURE_DIM)
    assert l_cls.shape == (B, NUM_CLASSES)

    # full MoCo forward (fused kernel + cached l_neg_near kernel)
    outs = model.forward(
        im_q, im_k, cls_only=False, prototypes_q=prototypes_q,
        use_proto_loss_v2=True, shuffle_key=k_shuf)

    feats_q, logits_q, logits_ins, k, logits_k, l_neg_near, loss_proto = outs
    jax.block_until_ready((feats_q, logits_q, logits_ins, k, logits_k, l_neg_near, loss_proto))

    assert feats_q.shape == (B, FEATURE_DIM)
    assert logits_q.shape == (B, NUM_CLASSES)
    assert logits_ins.shape == (B, 1 + K_BANK)
    assert k.shape == (B, FEATURE_DIM)
    assert logits_k.shape == (B, NUM_CLASSES)
    assert l_neg_near.shape == (K_BANK, K_BANK)
    assert bool(jnp.isfinite(loss_proto))

    print("KERNEL_OK")
</pallas_src>

<mosaic_0001>
module attributes {stable_mosaic.version = 11 : i64} {
  func.func @_encoder_kernel(%arg0: i32, %arg1: memref<2x512xbf16, #tpu.memory_space<vmem>>, %arg2: memref<512x128xbf16, #tpu.memory_space<vmem>>, %arg3: memref<1x128xf32, #tpu.memory_space<vmem>>, %arg4: memref<128x128xbf16, #tpu.memory_space<vmem>>, %arg5: memref<1x128xf32, #tpu.memory_space<vmem>>, %arg6: memref<2x128xf32, #tpu.memory_space<vmem>>, %arg7: memref<2x128xf32, #tpu.memory_space<vmem>>, %arg8: memref<2x128xf32, #tpu.memory_space<vmem>>) attributes {dimension_semantics = [#tpu.dimension_semantics<arbitrary>], iteration_bounds = array<i64: 2>, scalar_prefetch = 0 : i64, scratch_operands = 1 : i64, tpu.core_type = #tpu.core_type<tc>, window_params = [{transform_indices = @transform_0, window_bounds = array<i64: 2, 512>}, {transform_indices = @transform_1, window_bounds = array<i64: 512, 128>}, {pipeline_mode = #tpu.pipeline_mode<synchronous>, transform_indices = @transform_2, window_bounds = array<i64: 1, 128>}, {pipeline_mode = #tpu.pipeline_mode<synchronous>, transform_indices = @transform_3, window_bounds = array<i64: 128, 128>}, {pipeline_mode = #tpu.pipeline_mode<synchronous>, transform_indices = @transform_4, window_bounds = array<i64: 1, 128>}, {pipeline_mode = #tpu.pipeline_mode<synchronous>, transform_indices = @transform_5, window_bounds = array<i64: 2, 128>}, {pipeline_mode = #tpu.pipeline_mode<synchronous>, transform_indices = @transform_6, window_bounds = array<i64: 2, 128>}]} {
    %c0_i32 = arith.constant 0 : i32
    %0 = arith.cmpi eq, %arg0, %c0_i32 : i32
    %1 = arith.extui %0 : i1 to i32
    %c0_i32_0 = arith.constant 0 : i32
    %2 = arith.cmpi ne, %1, %c0_i32_0 : i32
    scf.if %2 {
      %cst_9 = arith.constant 0.000000e+00 : f32
      %12 = vector.broadcast %cst_9 : f32 to vector<2x128xf32>
      %c0_10 = arith.constant 0 : index
      %c0_11 = arith.constant 0 : index
      %13 = vector.load %arg8[%c0_10, %c0_11] : memref<2x128xf32, #tpu.memory_space<vmem>>, vector<2x128xf32>
      tpu.vector_store %arg8[%c0_10, %c0_11], %12 {strides = array<i32>} : memref<2x128xf32, #tpu.memory_space<vmem>>, vector<2x128xf32>,
    } else {
    }
    %c0 = arith.constant 0 : index
    %c0_1 = arith.constant 0 : index
    %3 = vector.load %arg8[%c0, %c0_1] : memref<2x128xf32, #tpu.memory_space<vmem>>, vector<2x128xf32>
    %c0_2 = arith.constant 0 : index
    %c0_3 = arith.constant 0 : index
    %4 = vector.load %arg1[%c0_2, %c0_3] : memref<2x512xbf16, #tpu.memory_space<vmem>>, vector<2x512xbf16>
    %c0_4 = arith.constant 0 : index
    %c0_5 = arith.constant 0 : index
    %5 = vector.load %arg2[%c0_4, %c0_5] : memref<512x128xbf16, #tpu.memory_space<vmem>>, vector<512x128xbf16>
    %cst = arith.constant dense<0.000000e+00> : vector<2x128xf32>
    %6 = tpu.matmul %4, %5, %cst {dimension_numbers = #tpu.dot_dimension_numbers<[1], [0], [0], [1], [0, 0, 1, 1], [], []>} : vector<2x512xbf16>, vector<512x128xbf16>, vector<2x128xf32> -> vector<2x128xf32>
    %7 = arith.addf %3, %6 : vector<2x128xf32>
    %c0_6 = arith.constant 0 : index
    %c0_7 = arith.constant 0 : index
    %8 = vector.load %arg8[%c0_6, %c0_7] : memref<2x128xf32, #tpu.memory_space<vmem>>, vector<2x128xf32>
    tpu.vector_store %arg8[%c0_6, %c0_7], %7 {strides = array<i32>} : memref<2x128xf32, #tpu.memory_space<vmem>>, vector<2x128xf32>,
    %c1_i32 = arith.constant 1 : i32
    %9 = arith.cmpi eq, %arg0, %c1_i32 : i32
    %10 = arith.extui %9 : i1 to i32
    %c0_i32_8 = arith.constant 0 : i32
    %11 = arith.cmpi ne, %10, %c0_i32_8 : i32
    scf.if %11 {
      %c0_9 = arith.constant 0 : index
      %c0_10 = arith.constant 0 : index
      %12 = vector.load %arg8[%c0_9, %c0_10] : memref<2x128xf32, #tpu.memory_space<vmem>>, vector<2x128xf32>
      %c0_11 = arith.constant 0 : index
      %c0_12 = arith.constant 0 : index
      %13 = vector.load %arg3[%c0_11, %c0_12] : memref<1x128xf32, #tpu.memory_space<vmem>>, vector<1x128xf32>
      %14 = vector.broadcast %13 : vector<1x128xf32> to vector<2x128xf32>
      %15 = arith.addf %12, %14 : vector<2x128xf32>
      %c0_13 = arith.constant 0 : index
      %c0_14 = arith.constant 0 : index
      %16 = vector.load %arg6[%c0_13, %c0_14] : memref<2x128xf32, #tpu.memory_space<vmem>>, vector<2x128xf32>
      tpu.vector_store %arg6[%c0_13, %c0_14], %15 {strides = array<i32>} : memref<2x128xf32, #tpu.memory_space<vmem>>, vector<2x128xf32>,
      %17 = arith.truncf %15 : vector<2x128xf32> to vector<2x128xbf16>
      %c0_15 = arith.constant 0 : index
      %c0_16 = arith.constant 0 : index
      %18 = vector.load %arg4[%c0_15, %c0_16] : memref<128x128xbf16, #tpu.memory_space<vmem>>, vector<128x128xbf16>
      %cst_17 = arith.constant dense<0.000000e+00> : vector<2x128xf32>
      %19 = tpu.matmul %17, %18, %cst_17 {dimension_numbers = #tpu.dot_dimension_numbers<[1], [0], [0], [1], [0, 0, 1, 1], [], []>} : vector<2x128xbf16>, vector<128x128xbf16>, vector<2x128xf32> -> vector<2x128xf32>
      %c0_18 = arith.constant 0 : index
      %c0_19 = arith.constant 0 : index
      %20 = vector.load %arg5[%c0_18, %c0_19] : memref<1x128xf32, #tpu.memory_space<vmem>>, vector<1x128xf32>
      %21 = vector.broadcast %20 : vector<1x128xf32> to vector<2x128xf32>
      %22 = arith.addf %19, %21 : vector<2x128xf32>
      %c0_20 = arith.constant 0 : index
      %c0_21 = arith.constant 0 : index
      %23 = vector.load %arg7[%c0_20, %c0_21] : memref<2x128xf32, #tpu.memory_space<vmem>>, vector<2x128xf32>
      tpu.vector_store %arg7[%c0_20, %c0_21], %22 {strides = array<i32>} : memref<2x128xf32, #tpu.memory_space<vmem>>, vector<2x128xf32>,
    } else {
    }
    return
  }
  func.func @transform_0(%arg0: i32) -> (i32, i32) {
    %c0_i32 = arith.constant 0 : i32
    %c0_i32_0 = arith.constant 0 : i32
    return %c0_i32, %arg0 : i32, i32
  }
  func.func @transform_1(%arg0: i32) -> (i32, i32) {
    %c0_i32 = arith.constant 0 : i32
    %c0_i32_0 = arith.constant 0 : i32
    return %arg0, %c0_i32 : i32, i32
  }
  func.func @transform_2(%arg0: i32) -> (i32, i32) {
    %c0_i32 = arith.constant 0 : i32
    %c0_i32_0 = arith.constant 0 : i32
    %c0_i32_1 = arith.constant 0 : i32
    return %c0_i32, %c0_i32_0 : i32, i32
  }
  func.func @transform_3(%arg0: i32) -> (i32, i32) {
    %c0_i32 = arith.constant 0 : i32
    %c0_i32_0 = arith.constant 0 : i32
    %c0_i32_1 = arith.constant 0 : i32
    return %c0_i32, %c0_i32_0 : i32, i32
  }
  func.func @transform_4(%arg0: i32) -> (i32, i32) {
    %c0_i32 = arith.constant 0 : i32
    %c0_i32_0 = arith.constant 0 : i32
    %c0_i32_1 = arith.constant 0 : i32
    return %c0_i32, %c0_i32_0 : i32, i32
  }
  func.func @transform_5(%arg0: i32) -> (i32, i32) {
    %c0_i32 = arith.constant 0 : i32
    %c0_i32_0 = arith.constant 0 : i32
    %c0_i32_1 = arith.constant 0 : i32
    return %c0_i32, %c0_i32_0 : i32, i32
  }
  func.func @transform_6(%arg0: i32) -> (i32, i32) {
    %c0_i32 = arith.constant 0 : i32
    %c0_i32_0 = arith.constant 0 : i32
    %c0_i32_1 = arith.constant 0 : i32
    return %c0_i32, %c0_i32_0 : i32, i32
  }
}

</mosaic_0001>

<llo_original>
// kernel: tpu_custom_call.1
$region0: #{tpu_custom_call.1}
  #allocation0 [shape = 'u32[]', space=smem, size = 0x4, offset = 0x4, fixed_abs, tag = 'smem constant byte address 0x4 - core index']
  #allocation1 [shape = 'u32[144,128]{1,0:T(1,128)}', space=vmem, size = 0x12000, scoped, tag = 'internal scratch']
  #allocation2 [shape = 'f32[2,128]{1,0:T(2,128)}', space=vmem, size = 0x400, scoped, tag = 'scratch operand']
  %s0 = inlined_call_operand.hbm [shape: bf16[2,1024], index: 0, kind: input, shape index: {}]
  %s1 = inlined_call_operand.hbm [shape: bf16[1024,128], index: 1, kind: input, shape index: {}]
  %s2 = inlined_call_operand.vmem [shape: f32[1,128], index: 2, kind: input, shape index: {}]
  %s3 = inlined_call_operand.hbm [shape: bf16[128,128], index: 3, kind: input, shape index: {}]
  %s4 = inlined_call_operand.vmem [shape: f32[1,128], index: 4, kind: input, shape index: {}]
  %s5 = inlined_call_operand.hbm [shape: f32[2,128], index: 5, kind: output, shape index: {0}]
  %s6 = inlined_call_operand.hbm [shape: f32[2,128], index: 6, kind: output, shape index: {1}]
  %7 = xla_tuple %s5, %s6
  %s8 = sld [smem:[#allocation0]]
  $region81: #{tpu_custom_call.1} parent=0
    _
  %s10 = ssub.s32 1, %s8
  %s11 = scalar_select 0, %s10, %s8
  $region1: #{tpu_custom_call.1} parent=0
    #allocation3 [shape = 'u8[4096]{0}', space=vmem, size = 0x1000, scoped, tag = 'input window, operand 0']
    #allocation4 [shape = 's32[2]{0}', space=sflag, size = 0x8, scoped, tag = 'scoped memory for tpu_custom_call.1']
    #allocation5 [shape = 's32[2]{0}', space=sflag, size = 0x8, scoped, tag = 'scoped memory for tpu_custom_call.1']
    #allocation6 [shape = 'u8[262144]{0}', space=vmem, size = 0x40000, scoped, tag = 'input window, operand 1']
    #allocation7 [shape = 's32[2]{0}', space=sflag, size = 0x8, scoped, tag = 'scoped memory for tpu_custom_call.1']
    #allocation8 [shape = 'u8[32768]{0}', space=vmem, size = 0x8000, scoped, tag = 'input window, operand 3, single buffered']
    #allocation9 [shape = 'u8[1024]{0}', space=vmem, size = 0x400, scoped, tag = 'output window, operand 0, single buffered']
    #allocation10 [shape = 'u8[1024]{0}', space=vmem, size = 0x400, scoped, tag = 'output window, operand 1, single buffered']
    #allocation11 [shape = 's32[1]{0}', space=sflag, size = 0x4, scoped, tag = 'scoped memory for tpu_custom_call.1']
    %12 = vsyncpa [#allocation4], 0
    %s13 = scalar_lea.sflag [#allocation4], 1
    %14 = vsyncpa %s13, 0
    %15 = vsyncpa [#allocation7], 0
    %s16 = scalar_lea.sflag [#allocation7], 1
    %17 = vsyncpa %s16, 0
    %18 = vsyncpa [#allocation5], 0
    %19 = vsyncpa [#allocation11], 0
    loop: start=0, step=1, limit=4
    $region2: #{tpu_custom_call.1} parent=1 // loop_pre_header
      _
    $region3: #{tpu_custom_call.1} parent=1 // loop_header
      %s21 = sphi 0, %s25
      %p22 = scmp.ge.s32.totalorder %s21, 4
      %s31 = sphi 0, %s33
      %s34 = sphi 0, %s31
      %s35 = sphi 0, %s34
      %s51 = sphi 0, %s35
      %s57 = sphi 0, %s59
      %s60 = sphi 0, %s57
      %s61 = sphi 0, %s60
      %s77 = sphi 0, %s61
      %s81 = sphi 0, %s81
      %s83 = sphi 0, %s81
      %s84 = sphi 0, %s83
      %s98 = sphi 0, %s84
      %s102 = sphi 0, %s102
      %s104 = sphi 0, %s102
      %s105 = sphi 0, %s104
      %s119 = sphi 0, %s105
      %s123 = sphi 0, %s123
      %s125 = sphi 0, %s123
      %s126 = sphi 0, %s125
      %s140 = sphi 0, %s126
      %s144 = sphi 0, %s144
      %s146 = sphi 0, %s144
      %s147 = sphi 0, %s146
      %s161 = sphi 0, %s147
      %s165 = sphi 0, %s165
      %s167 = sphi 0, %s165
      %s168 = sphi 0, %s167
      %s182 = sphi 0, %s168
    $region4: #{tpu_custom_call.1} parent=1 // loop_header_branch
      %24 = sbr.rel (%p22) target = $region8
    $region5: #{tpu_custom_call.1} parent=1 // loop_body
      %s26 = ssub.s32 %s21, 1
      %s27 = ssub.s32 %s21, 2
      %s28 = sadd.s32 %s21, 1
      %s29 = ssub.s32 %s21, %s28
      %p30 = scmp.eq.s32.totalorder %s29, 0
      %s32 = sadd.s32 %s31, 1
      %s33 = scalar_select %p30, %s31, %s32
      %p36 = pneg %p30
      %p37 = scmp.eq.s32.totalorder %s21, 1
      %p38 = por %p36, %p37
      %p39 = scmp.ne.s32.totalorder %s31, %s34
      %p40 = scmp.eq.s32.totalorder %s21, 0
      %p41 = por %p39, %p40
      %p42 = scmp.ne.s32.totalorder %s31, %s34
      %p43 = scmp.eq.s32.totalorder %s26, 1
      %p44 = por %p42, %p43
      %p45 = scmp.ne.s32.totalorder %s34, %s35
      %p46 = scmp.eq.s32.totalorder %s26, 0
      %p47 = por %p45, %p46
      %p48 = scmp.ne.s32.totalorder %s34, %s35
      %p49 = scmp.eq.s32.totalorder %s27, 1
      %p50 = por %p48, %p49
      %p52 = scmp.ne.s32.totalorder %s35, %s51
      %p53 = scmp.eq.s32.totalorder %s27, 0
      %p54 = por %p52, %p53
      %s55 = ssub.s32 %s21, %s28
      %p56 = scmp.eq.s32.totalorder %s55, 0
      %s58 = sadd.s32 %s57, 1
      %s59 = scalar_select %p56, %s57, %s58
      %p62 = pneg %p56
      %p63 = scmp.eq.s32.totalorder %s21, 1
      %p64 = por %p62, %p63
      %p65 = scmp.ne.s32.totalorder %s57, %s60
      %p66 = scmp.eq.s32.totalorder %s21, 0
      %p67 = por %p65, %p66
      %p68 = scmp.ne.s32.totalorder %s57, %s60
      %p69 = scmp.eq.s32.totalorder %s26, 1
      %p70 = por %p68, %p69
      %p71 = scmp.ne.s32.totalorder %s60, %s61
      %p72 = scmp.eq.s32.totalorder %s26, 0
      %p73 = por %p71, %p72
      %p74 = scmp.ne.s32.totalorder %s60, %s61
      %p75 = scmp.eq.s32.totalorder %s27, 1
      %p76 = por %p74, %p75
      %p78 = scmp.ne.s32.totalorder %s61, %s77
      %p79 = scmp.eq.s32.totalorder %s27, 0
      %p80 = por %p78, %p79
      %s82 = sadd.s32 %s81, 1
      %p85 = scmp.eq.s32.totalorder %s21, 1
      %p86 = scmp.ne.s32.totalorder %s81, %s83
      %p87 = scmp.eq.s32.totalorder %s21, 0
      %p88 = por %p86, %p87
      %p89 = scmp.ne.s32.totalorder %s81, %s83
      %p90 = scmp.eq.s32.totalorder %s26, 1
      %p91 = por %p89, %p90
      %p92 = scmp.ne.s32.totalorder %s83, %s84
      %p93 = scmp.eq.s32.totalorder %s26, 0
      %p94 = por %p92, %p93
      %p95 = scmp.ne.s32.totalorder %s83, %s84
      %p96 = scmp.eq.s32.totalorder %s27, 1
      %p97 = por %p95, %p96
      %p99 = scmp.ne.s32.totalorder %s84, %s98
      %p100 = scmp.eq.s32.totalorder %s27, 0
      %p101 = por %p99, %p100
      %s103 = sadd.s32 %s102, 1
      %p106 = scmp.eq.s32.totalorder %s21, 1
      %p107 = scmp.ne.s32.totalorder %s102, %s104
      %p108 = scmp.eq.s32.totalorder %s21, 0
      %p109 = por %p107, %p108
      %p110 = scmp.ne.s32.totalorder %s102, %s104
      %p111 = scmp.eq.s32.totalorder %s26, 1
      %p112 = por %p110, %p111
      %p113 = scmp.ne.s32.totalorder %s104, %s105
      %p114 = scmp.eq.s32.totalorder %s26, 0
      %p115 = por %p113, %p114
      %p116 = scmp.ne.s32.totalorder %s104, %s105
      %p117 = scmp.eq.s32.totalorder %s27, 1
      %p118 = por %p116, %p117
      %p120 = scmp.ne.s32.totalorder %s105, %s119
      %p121 = scmp.eq.s32.totalorder %s27, 0
      %p122 = por %p120, %p121
      %s124 = sadd.s32 %s123, 1
      %p127 = scmp.eq.s32.totalorder %s21, 1
      %p128 = scmp.ne.s32.totalorder %s123, %s125
      %p129 = scmp.eq.s32.totalorder %s21, 0
      %p130 = por %p128, %p129
      %p131 = scmp.ne.s32.totalorder %s123, %s125
      %p132 = scmp.eq.s32.totalorder %s26, 1
      %p133 = por %p131, %p132
      %p134 = scmp.ne.s32.totalorder %s125, %s126
      %p135 = scmp.eq.s32.totalorder %s26, 0
      %p136 = por %p134, %p135
      %p137 = scmp.ne.s32.totalorder %s125, %s126
      %p138 = scmp.eq.s32.totalorder %s27, 1
      %p139 = por %p137, %p138
      %p141 = scmp.ne.s32.totalorder %s126, %s140
      %p142 = scmp.eq.s32.totalorder %s27, 0
      %p143 = por %p141, %p142
      %s145 = sadd.s32 %s144, 1
      %p148 = scmp.eq.s32.totalorder %s21, 1
      %p149 = scmp.ne.s32.totalorder %s144, %s146
      %p150 = scmp.eq.s32.totalorder %s21, 0
      %p151 = por %p149, %p150
      %p152 = scmp.ne.s32.totalorder %s144, %s146
      %p153 = scmp.eq.s32.totalorder %s26, 1
      %p154 = por %p152, %p153
      %p155 = scmp.ne.s32.totalorder %s146, %s147
      %p156 = scmp.eq.s32.totalorder %s26, 0
      %p157 = por %p155, %p156
      %p158 = scmp.ne.s32.totalorder %s146, %s147
      %p159 = scmp.eq.s32.totalorder %s27, 1
      %p160 = por %p158, %p159
      %p162 = scmp.ne.s32.totalorder %s147, %s161
      %p163 = scmp.eq.s32.totalorder %s27, 0
      %p164 = por %p162, %p163
      %s166 = sadd.s32 %s165, 1
      %p169 = scmp.eq.s32.totalorder %s21, 1
      %p170 = scmp.ne.s32.totalorder %s165, %s167
      %p171 = scmp.eq.s32.totalorder %s21, 0
      %p172 = por %p170, %p171
      %p173 = scmp.ne.s32.totalorder %s165, %s167
      %p174 = scmp.eq.s32.totalorder %s26, 1
      %p175 = por %p173, %p174
      %p176 = scmp.ne.s32.totalorder %s167, %s168
      %p177 = scmp.eq.s32.totalorder %s26, 0
      %p178 = por %p176, %p177
      %p179 = scmp.ne.s32.totalorder %s167, %s168
      %p180 = scmp.eq.s32.totalorder %s27, 1
      %p181 = por %p179, %p180
      %p183 = scmp.ne.s32.totalorder %s168, %s182
      %p184 = scmp.eq.s32.totalorder %s27, 0
      %p185 = por %p183, %p184
      %p186 = scmp.le.s32.totalorder 1, %s21
      %p187 = scmp.lt.s32.totalorder %s21, 3
      %p188 = pnand %p186, %p187
      %p189 = pneg %p188
      // Predicated region
      $region9: #{tpu_custom_call.1} parent=5 // pred_check
        _
      $region10: #{tpu_custom_call.1} parent=5 // pred_check_branch
        %191 = sbr.rel (%p188) target = $region12
      $region11: #{tpu_custom_call.1} parent=5 // pred_region
        %s192 = ssub.s32 %s21, 1
        // Predicated region
        $region13: #{tpu_custom_call.1} parent=11 // pred_check
          %p193 = pneg %p94
        $region14: #{tpu_custom_call.1} parent=11 // pred_check_branch
          %195 = sbr.rel (%p193) target = $region16
        $region15: #{tpu_custom_call.1} parent=11 // pred_region
          _
        $region16: #{tpu_custom_call.1} parent=11 // pred_fallthru
          _
        // Predicated region
        $region17: #{tpu_custom_call.1} parent=11 // pred_check
          %p196 = pneg %p115
        $region18: #{tpu_custom_call.1} parent=11 // pred_check_branch
          %198 = sbr.rel (%p196) target = $region20
        $region19: #{tpu_custom_call.1} parent=11 // pred_region
          %s200 = ssub.s32 1024, 1024
          %201 = vsyncadd [#allocation7], %s200
          %s202 = sshll.u32 [#allocation8], 4
          %s203 = int_to_ptr.vmem [resolvable:$true] %s202
          %208 = dma.hbm_to_vmem [thread:$0]  %s3, 1024, %s203, [#allocation7], 64, 64, 4
        $region20: #{tpu_custom_call.1} parent=11 // pred_fallthru
          _
        // Predicated region
        $region21: #{tpu_custom_call.1} parent=11 // pred_check
          %p209 = pneg %p136
        $region22: #{tpu_custom_call.1} parent=11 // pred_check_branch
          %211 = sbr.rel (%p209) target = $region24
        $region23: #{tpu_custom_call.1} parent=11 // pred_region
          _
        $region24: #{tpu_custom_call.1} parent=11 // pred_fallthru
          _
      $region12: #{tpu_custom_call.1} parent=5 // pred_fallthru
        _
      %p212 = scmp.lt.s32.totalorder %s21, 2
      // Predicated region
      $region25: #{tpu_custom_call.1} parent=5 // pred_check
        %p213 = pneg %p212
      $region26: #{tpu_custom_call.1} parent=5 // pred_check_branch
        %215 = sbr.rel (%p213) target = $region28
      $region27: #{tpu_custom_call.1} parent=5 // pred_region
        // Predicated region
        $region29: #{tpu_custom_call.1} parent=27 // pred_check
          %p216 = pneg %p41
        $region30: #{tpu_custom_call.1} parent=27 // pred_check_branch
          %218 = sbr.rel (%p216) target = $region32
        $region31: #{tpu_custom_call.1} parent=27 // pred_region
          %s219 = sand.u32 %s31, 1
          %s220 = scalar_lea.sflag [#allocation4], %s219
          %s221 = sand.u32 %s31, 1
          %s222 = smul.addr %s221, 4
          %s223 = scalar_lea.vmem [#allocation3], %s222
          %s224 = smul.u32 4, %s21
          %s226 = ssub.s32 64, 64
          %227 = vsyncadd %s220, %s226
          %s228 = smul.addr %s224, 16
          %s229 = scalar_lea.hbm %s0, %s228
          %s231 = sshll.u32 %s223, 4
          %s232 = int_to_ptr.vmem [resolvable:$true] %s231
          %234 = dma.hbm_to_vmem [thread:$0]  %s229, 64, %s232, %s220
        $region32: #{tpu_custom_call.1} parent=27 // pred_fallthru
          _
        // Predicated region
        $region33: #{tpu_custom_call.1} parent=27 // pred_check
          %p235 = pneg %p67
        $region34: #{tpu_custom_call.1} parent=27 // pred_check_branch
          %237 = sbr.rel (%p235) target = $region36
        $region35: #{tpu_custom_call.1} parent=27 // pred_region
          %s238 = sand.u32 %s21, 1
          %s239 = scalar_lea.sflag [#allocation7], %s238
          %s240 = sand.u32 %s57, 1
          %s241 = smul.addr %s240, 256
          %s242 = scalar_lea.vmem [#allocation6], %s241
          %s243 = smul.u32 64, %s21
          %s245 = ssub.s32 4096, 4096
          %246 = vsyncadd %s239, %s245
          %s247 = smul.addr %s243, 64
          %s248 = scalar_lea.hbm %s1, %s247
          %s249 = sshll.u32 %s242, 4
          %s250 = int_to_ptr.vmem [resolvable:$true] %s249
          %255 = dma.hbm_to_vmem [thread:$0]  %s248, 4096, %s250, %s239, 64, 64, 4
        $region36: #{tpu_custom_call.1} parent=27 // pred_fallthru
          _
      $region28: #{tpu_custom_call.1} parent=5 // pred_fallthru
        _
      %p256 = scmp.le.s32.totalorder 1, %s21
      %p257 = scmp.lt.s32.totalorder %s21, 3
      %p258 = pnand %p256, %p257
      %p259 = pneg %p258
      // Predicated region
      $region37: #{tpu_custom_call.1} parent=5 // pred_check
        _
      $region38: #{tpu_custom_call.1} parent=5 // pred_check_branch
        %261 = sbr.rel (%p258) target = $region40
      $region39: #{tpu_custom_call.1} parent=5 // pred_region
        %s262 = ssub.s32 %s21, 1
        %s263 = sand.u32 %s34, 1
        %s264 = scalar_lea.sflag [#allocation4], %s263
        %s265 = sand.u32 %s34, 1
        %s266 = smul.addr %s265, 4
        %s267 = scalar_lea.vmem [#allocation3], %s266
        // Predicated region
        $region41: #{tpu_custom_call.1} parent=39 // pred_check
          %p268 = pneg %p47
        $region42: #{tpu_custom_call.1} parent=39 // pred_check_branch
          %270 = sbr.rel (%p268) target = $region44
        $region43: #{tpu_custom_call.1} parent=39 // pred_region
          %271 = dma.done %s264, 64
        $region44: #{tpu_custom_call.1} parent=39 // pred_fallthru
          _
        %s272 = sand.u32 %s26, 1
        %s273 = scalar_lea.sflag [#allocation7], %s272
        %s274 = sand.u32 %s60, 1
        %s275 = smul.addr %s274, 256
        %s276 = scalar_lea.vmem [#allocation6], %s275
        // Predicated region
        $region45: #{tpu_custom_call.1} parent=39 // pred_check
          %p277 = pneg %p73
        $region46: #{tpu_custom_call.1} parent=39 // pred_check_branch
          %279 = sbr.rel (%p277) target = $region48
        $region47: #{tpu_custom_call.1} parent=39 // pred_region
          %280 = dma.done %s273, 4096
        $region48: #{tpu_custom_call.1} parent=39 // pred_fallthru
          _
        // Predicated region
        $region49: #{tpu_custom_call.1} parent=39 // pred_check
          %p281 = pneg %p115
        $region50: #{tpu_custom_call.1} parent=39 // pred_check_branch
          %283 = sbr.rel (%p281) target = $region52
        $region51: #{tpu_custom_call.1} parent=39 // pred_region
          %284 = dma.done [#allocation7], 1024
        $region52: #{tpu_custom_call.1} parent=39 // pred_fallthru
          _
        %s285 = sand.u32 %s34, 1
        %s286 = scalar_lea.sflag [#allocation4], %s285
        %s287 = sand.u32 %s34, 1
        %s288 = smul.addr %s287, 4
        %s289 = scalar_lea.vmem [#allocation3], %s288
        %p290 = pneg %p47
        %p291 = pneg %p44
        %s292 = sand.u32 %s26, 1
        %s293 = scalar_lea.sflag [#allocation7], %s292
        %s294 = sand.u32 %s60, 1
        %s295 = smul.addr %s294, 256
        %s296 = scalar_lea.vmem [#allocation6], %s295
        %p297 = pneg %p73
        %p298 = pneg %p70
        %p299 = pneg %p94
        %p300 = pneg %p91
        %p301 = pneg %p115
        %p302 = pneg %p112
        %p303 = pneg %p136
        %p304 = pneg %p133
        %p305 = pneg %p157
        %p306 = pneg %p154
        %p307 = pneg %p178
        %p308 = pneg %p175
        %s309 = smul.u32 4, %s26
        %s310 = smul.u32 64, %s26
        %p312 = scmp.eq.s32.totalorder %s26, 0
        // Predicated region
        $region53: #{tpu_custom_call.1} parent=39 // pred_check
          %p313 = pneg %p312
        $region54: #{tpu_custom_call.1} parent=39 // pred_check_branch
          %315 = sbr.rel (%p313) target = $region56
        $region55: #{tpu_custom_call.1} parent=39 // pred_region
          %316 = vst [vmem:[#allocation2] sm:$0x3] 0.0
        $region56: #{tpu_custom_call.1} parent=39 // pred_fallthru
          _
        %v317 = vld [vmem:[#allocation2] sm:$0x3]
        %v318 = vld [vmem:[%s267] sm:$0xf]
        %v319 = vld [vmem:[%s276] sm:$0xf]
        %v320 = vld [vmem:[%s276 + $0x4] sm:$0xf]
        %v321 = vld [vmem:[%s276 + $0x8] sm:$0xf]
        %v322 = vld [vmem:[%s276 + $0xc] sm:$0xf]
        %v323 = vld [vmem:[%s276 + $0x10] sm:$0xf]
        %v324 = vld [vmem:[%s276 + $0x14] sm:$0xf]
        %v325 = vld [vmem:[%s276 + $0x18] sm:$0xf]
        %v326 = vld [vmem:[%s276 + $0x1c] sm:$0xf]
        %v327 = vld [vmem:[%s276 + $0x20] sm:$0xf]
        %v328 = vld [vmem:[%s276 + $0x24] sm:$0xf]
        %v329 = vld [vmem:[%s276 + $0x28] sm:$0xf]
        %v330 = vld [vmem:[%s276 + $0x2c] sm:$0xf]
        %v331 = vld [vmem:[%s276 + $0x30] sm:$0xf]
        %v332 = vld [vmem:[%s276 + $0x34] sm:$0xf]
        %v333 = vld [vmem:[%s276 + $0x38] sm:$0xf]
        %v334 = vld [vmem:[%s276 + $0x3c] sm:$0xf]
        %v335 = vld [vmem:[%s276 + $0x40] sm:$0xf]
        %v336 = vld [vmem:[%s276 + $0x44] sm:$0xf]
        %v337 = vld [vmem:[%s276 + $0x48] sm:$0xf]
        %v338 = vld [vmem:[%s276 + $0x4c] sm:$0xf]
        %v339 = vld [vmem:[%s276 + $0x50] sm:$0xf]
        %v340 = vld [vmem:[%s276 + $0x54] sm:$0xf]
        %v341 = vld [vmem:[%s276 + $0x58] sm:$0xf]
        %v342 = vld [vmem:[%s276 + $0x5c] sm:$0xf]
        %v343 = vld [vmem:[%s276 + $0x60] sm:$0xf]
        %v344 = vld [vmem:[%s276 + $0x64] sm:$0xf]
        %v345 = vld [vmem:[%s276 + $0x68] sm:$0xf]
        %v346 = vld [vmem:[%s276 + $0x6c] sm:$0xf]
        %v347 = vld [vmem:[%s276 + $0x70] sm:$0xf]
        %v348 = vld [vmem:[%s276 + $0x74] sm:$0xf]
        %v349 = vld [vmem:[%s276 + $0x78] sm:$0xf]
        %v350 = vld [vmem:[%s276 + $0x7c] sm:$0xf]
        %v351 = vld [vmem:[%s276 + $0x80] sm:$0xf]
        %v352 = vld [vmem:[%s276 + $0x84] sm:$0xf]
        %v353 = vld [vmem:[%s276 + $0x88] sm:$0xf]
        %v354 = vld [vmem:[%s276 + $0x8c] sm:$0xf]
        %v355 = vld [vmem:[%s276 + $0x90] sm:$0xf]
        %v356 = vld [vmem:[%s276 + $0x94] sm:$0xf]
        %v357 = vld [vmem:[%s276 + $0x98] sm:$0xf]
        %v358 = vld [vmem:[%s276 + $0x9c] sm:$0xf]
        %v359 = vld [vmem:[%s276 + $0xa0] sm:$0xf]
        %v360 = vld [vmem:[%s276 + $0xa4] sm:$0xf]
        %v361 = vld [vmem:[%s276 + $0xa8] sm:$0xf]
        %v362 = vld [vmem:[%s276 + $0xac] sm:$0xf]
        %v363 = vld [vmem:[%s276 + $0xb0] sm:$0xf]
        %v364 = vld [vmem:[%s276 + $0xb4] sm:$0xf]
        %v365 = vld [vmem:[%s276 + $0xb8] sm:$0xf]
        %v366 = vld [vmem:[%s276 + $0xbc] sm:$0xf]
        %v367 = vld [vmem:[%s276 + $0xc0] sm:$0xf]
        %v368 = vld [vmem:[%s276 + $0xc4] sm:$0xf]
        %v369 = vld [vmem:[%s276 + $0xc8] sm:$0xf]
        %v370 = vld [vmem:[%s276 + $0xcc] sm:$0xf]
        %v371 = vld [vmem:[%s276 + $0xd0] sm:$0xf]
        %v372 = vld [vmem:[%s276 + $0xd4] sm:$0xf]
        %v373 = vld [vmem:[%s276 + $0xd8] sm:$0xf]
        %v374 = vld [vmem:[%s276 + $0xdc] sm:$0xf]
        %v375 = vld [vmem:[%s276 + $0xe0] sm:$0xf]
        %v376 = vld [vmem:[%s276 + $0xe4] sm:$0xf]
        %v377 = vld [vmem:[%s276 + $0xe8] sm:$0xf]
        %v378 = vld [vmem:[%s276 + $0xec] sm:$0xf]
        %v379 = vld [vmem:[%s276 + $0xf0] sm:$0xf]
        %v380 = vld [vmem:[%s276 + $0xf4] sm:$0xf]
        %v381 = vld [vmem:[%s276 + $0xf8] sm:$0xf]
        %v382 = vld [vmem:[%s276 + $0xfc] sm:$0xf]
        %v385 = vunpack.c.l.s4 1966171168
        %v386 = vunpack.c.0.s8 %v385
        %v387 = vlaneseq
        %v388 = vshrl.u32 %v387, 7
        %v389 = vsub.s32 %v386, %v388
        %v390 = vrot.slane %v318, %v389
        %v391 = vcombine.high %v390, %v390
        %v393 = vunpack.c.l.s4 1966171168
        %v394 = vunpack.c.0.s8 %v393
        %v395 = vlaneseq
        %v396 = vshrl.u32 %v395, 7
        %v397 = vsub.s32 %v394, %v396
        %v398 = vrot.slane %v390, %v397
        %v400 = vunpack.c.l.s4 1966171168
        %v401 = vunpack.c.0.s8 %v400
        %v402 = vlaneseq
        %v403 = vshrl.u32 %v402, 7
        %v404 = vsub.s32 %v401, %v403
        %v405 = vrot.slane %v391, %v404
        %v406 = vcombine.high %v398, %v398
        %v407 = vcombine.high %v405, %v405
        %v476 = vunpack.c.l.b16 %v319
        %v477 = vunpack.c.l.b16 %v320
        %v478 = vunpack.c.l.b16 %v321
        %v479 = vunpack.c.l.b16 %v322
        %v480 = vunpack.c.l.b16 %v323
        %v481 = vunpack.c.l.b16 %v324
        %v482 = vunpack.c.l.b16 %v325
        %v483 = vunpack.c.l.b16 %v326
        %v484 = vunpack.c.l.b16 %v327
        %v485 = vunpack.c.l.b16 %v328
        %v486 = vunpack.c.l.b16 %v329
        %v487 = vunpack.c.l.b16 %v330
        %v488 = vunpack.c.l.b16 %v331
        %v489 = vunpack.c.l.b16 %v332
        %v490 = vunpack.c.l.b16 %v333
        %v491 = vunpack.c.l.b16 %v334
        %v492 = vunpack.c.l.b16 %v335
        %v493 = vunpack.c.l.b16 %v336
        %v494 = vunpack.c.l.b16 %v337
        %v495 = vunpack.c.l.b16 %v338
        %v496 = vunpack.c.l.b16 %v339
        %v497 = vunpack.c.l.b16 %v340
        %v498 = vunpack.c.l.b16 %v341
        %v499 = vunpack.c.l.b16 %v342
        %v500 = vunpack.c.l.b16 %v343
        %v501 = vunpack.c.l.b16 %v344
        %v502 = vunpack.c.l.b16 %v345
        %v503 = vunpack.c.l.b16 %v346
        %v504 = vunpack.c.l.b16 %v347
        %v505 = vunpack.c.l.b16 %v348
        %v506 = vunpack.c.l.b16 %v349
        %v507 = vunpack.c.l.b16 %v350
        %v508 = vunpack.c.l.b16 %v351
        %v509 = vunpack.c.l.b16 %v352
        %v510 = vunpack.c.l.b16 %v353
        %v511 = vunpack.c.l.b16 %v354
        %v512 = vunpack.c.l.b16 %v355
        %v513 = vunpack.c.l.b16 %v356
        %v514 = vunpack.c.l.b16 %v357
        %v515 = vunpack.c.l.b16 %v358
        %v516 = vunpack.c.l.b16 %v359
        %v517 = vunpack.c.l.b16 %v360
        %v518 = vunpack.c.l.b16 %v361
        %v519 = vunpack.c.l.b16 %v362
        %v520 = vunpack.c.l.b16 %v363
        %v521 = vunpack.c.l.b16 %v364
        %v522 = vunpack.c.l.b16 %v365
        %v523 = vunpack.c.l.b16 %v366
        %v524 = vunpack.c.l.b16 %v367
        %v525 = vunpack.c.l.b16 %v368
        %v526 = vunpack.c.l.b16 %v369
        %v527 = vunpack.c.l.b16 %v370
        %v528 = vunpack.c.l.b16 %v371
        %v529 = vunpack.c.l.b16 %v372
        %v530 = vunpack.c.l.b16 %v373
        %v531 = vunpack.c.l.b16 %v374
        %v532 = vunpack.c.l.b16 %v375
        %v533 = vunpack.c.l.b16 %v376
        %v534 = vunpack.c.l.b16 %v377
        %v535 = vunpack.c.l.b16 %v378
        %v536 = vunpack.c.l.b16 %v379
        %v537 = vunpack.c.l.b16 %v380
        %v538 = vunpack.c.l.b16 %v381
        %v539 = vunpack.c.l.b16 %v382
        %v540 = vpack.c.b16 %v477, %v476
        %v541 = vpack.c.b16 %v479, %v478
        %v542 = vpack.c.b16 %v481, %v480
        %v543 = vpack.c.b16 %v483, %v482
        %v544 = vpack.c.b16 %v485, %v484
        %v545 = vpack.c.b16 %v487, %v486
        %v546 = vpack.c.b16 %v489, %v488
        %v547 = vpack.c.b16 %v491, %v490
        %v548 = vpack.c.b16 %v493, %v492
        %v549 = vpack.c.b16 %v495, %v494
        %v550 = vpack.c.b16 %v497, %v496
        %v551 = vpack.c.b16 %v499, %v498
        %v552 = vpack.c.b16 %v501, %v500
        %v553 = vpack.c.b16 %v503, %v502
        %v554 = vpack.c.b16 %v505, %v504
        %v555 = vpack.c.b16 %v507, %v506
        %v556 = vpack.c.b16 %v509, %v508
        %v557 = vpack.c.b16 %v511, %v510
        %v558 = vpack.c.b16 %v513, %v512
        %v559 = vpack.c.b16 %v515, %v514
        %v560 = vpack.c.b16 %v517, %v516
        %v561 = vpack.c.b16 %v519, %v518
        %v562 = vpack.c.b16 %v521, %v520
        %v563 = vpack.c.b16 %v523, %v522
        %v564 = vpack.c.b16 %v525, %v524
        %v565 = vpack.c.b16 %v527, %v526
        %v566 = vpack.c.b16 %v529, %v528
        %v567 = vpack.c.b16 %v531, %v530
        %v568 = vpack.c.b16 %v533, %v532
        %v569 = vpack.c.b16 %v535, %v534
        %v570 = vpack.c.b16 %v537, %v536
        %v571 = vpack.c.b16 %v539, %v538
        %604 = vmatprep.subr.bf16.mxu0 0
        %605 = vmatpush1.bf16.msra.mxu0 %v547
        %606 = vmatprep.subr.bf16.mxu0 0
        %607 = vmatpush1.bf16.msra.mxu0 %v546
        %608 = vmatprep.subr.bf16.mxu0 0
        %609 = vmatpush1.bf16.msra.mxu0 %v545
        %610 = vmatprep.subr.bf16.mxu0 0
        %611 = vmatpush1.bf16.msra.mxu0 %v544
        %612 = vmatprep.subr.bf16.mxu0 0
        %613 = vmatpush1.bf16.msra.mxu0 %v543
        %614 = vmatprep.subr.bf16.mxu0 0
        %615 = vmatpush1.bf16.msra.mxu0 %v542
        %616 = vmatprep.subr.bf16.mxu0 0
        %617 = vmatpush1.bf16.msra.mxu0 %v541
        %618 = vmatprep.subr.bf16.mxu0 0
        %619 = vmatpush1.bf16.msra.mxu0 %v540
        %620 = vmatprep.subr.bf16.mxu0 0
        %621 = vmatpush2.bf16.msra.mxu0 %v555
        %622 = vmatprep.subr.bf16.mxu0 0
        %623 = vmatpush2.bf16.msra.mxu0 %v554
        %624 = vmatprep.subr.bf16.mxu0 0
        %625 = vmatpush2.bf16.msra.mxu0 %v553
        %626 = vmatprep.subr.bf16.mxu0 0
        %627 = vmatpush2.bf16.msra.mxu0 %v552
        %628 = vmatprep.subr.bf16.mxu0 0
        %629 = vmatpush2.bf16.msra.mxu0 %v551
        %630 = vmatprep.subr.bf16.mxu0 0
        %631 = vmatpush2.bf16.msra.mxu0 %v550
        %632 = vmatprep.subr.bf16.mxu0 0
        %633 = vmatpush2.bf16.msra.mxu0 %v549
        %634 = vmatprep.subr.bf16.mxu0 0
        %635 = vmatpush2.bf16.msra.mxu0 %v548
        %636 = vmatprep.mubr.bf16.mxu0 %v405
        %637 = vmatmul.mubr.bf16.gmra.mxu0 %v398
        %v638 = vpop.f32.mrf.mxu0
        %v639 = vadd.f32 0.0, %v638
        %v640 = vpop.f32.mrf.mxu0
        %v641 = vpop.f32.mrf.mxu0
        %v642 = vpop.f32.mrf.mxu0
        %643 = vdwg.mxu0
        %644 = vmatprep.subr.bf16.mxu0 0
        %645 = vmatpush1.bf16.msra.mxu0 %v563
        %646 = vmatprep.subr.bf16.mxu0 0
        %647 = vmatpush1.bf16.msra.mxu0 %v562
        %648 = vmatprep.subr.bf16.mxu0 0
        %649 = vmatpush1.bf16.msra.mxu0 %v561
        %650 = vmatprep.subr.bf16.mxu0 0
        %651 = vmatpush1.bf16.msra.mxu0 %v560
        %652 = vmatprep.subr.bf16.mxu0 0
        %653 = vmatpush1.bf16.msra.mxu0 %v559
        %654 = vmatprep.subr.bf16.mxu0 0
        %655 = vmatpush1.bf16.msra.mxu0 %v558
        %656 = vmatprep.subr.bf16.mxu0 0
        %657 = vmatpush1.bf16.msra.mxu0 %v557
        %658 = vmatprep.subr.bf16.mxu0 0
        %659 = vmatpush1.bf16.msra.mxu0 %v556
        %660 = vmatprep.subr.bf16.mxu0 0
        %661 = vmatpush2.bf16.msra.mxu0 %v571
        %662 = vmatprep.subr.bf16.mxu0 0
        %663 = vmatpush2.bf16.msra.mxu0 %v570
        %664 = vmatprep.subr.bf16.mxu0 0
        %665 = vmatpush2.bf16.msra.mxu0 %v569
        %666 = vmatprep.subr.bf16.mxu0 0
        %667 = vmatpush2.bf16.msra.mxu0 %v568
        %668 = vmatprep.subr.bf16.mxu0 0
        %669 = vmatpush2.bf16.msra.mxu0 %v567
        %670 = vmatprep.subr.bf16.mxu0 0
        %671 = vmatpush2.bf16.msra.mxu0 %v566
        %672 = vmatprep.subr.bf16.mxu0 0
        %673 = vmatpush2.bf16.msra.mxu0 %v565
        %674 = vmatprep.subr.bf16.mxu0 0
        %675 = vmatpush2.bf16.msra.mxu0 %v564
        %676 = vmatprep.mubr.bf16.mxu0 %v407
        %677 = vmatmul.mubr.bf16.gmra.mxu0 %v406
        %v678 = vpop.f32.mrf.mxu0
        %v679 = vadd.f32 %v639, %v678
        %v680 = vpop.f32.mrf.mxu0
        %v681 = vpop.f32.mrf.mxu0
        %v682 = vpop.f32.mrf.mxu0
        %683 = vdwg.mxu0
        %v684 = vadd.f32 %v317, %v679
        %685 = vst [vmem:[#allocation2] sm:$0x3] %v684
        %p686 = scmp.eq.s32.totalorder %s26, 1
        // Predicated region
        $region57: #{tpu_custom_call.1} parent=39 // pred_check
          %p687 = pneg %p686
        $region58: #{tpu_custom_call.1} parent=39 // pred_check_branch
          %689 = sbr.rel (%p687) target = $region60
        $region59: #{tpu_custom_call.1} parent=39 // pred_region
          %v690 = vld [vmem:[#allocation2] sm:$0x3]
          %v691 = vld [vmem:[%s2] sm:$0x1]
          %v693 = vlaneseq
          %v694 = vshrl.u32 %v693, 7
          %v695 = vsub.s32 0, %v694
          %v696 = vrot.slane %v691, %v695
          %v698 = vadd.f32 %v690, %v696
          %699 = vst [vmem:[#allocation9] sm:$0x3] %v698
          %v700 = vpack.c.bf16 %v698, %v698
          %v701 = vld [vmem:[#allocation8] sm:$0xf]
          %v702 = vld [vmem:[#allocation8 + $0x4] sm:$0xf]
          %v703 = vld [vmem:[#allocation8 + $0x8] sm:$0xf]
          %v704 = vld [vmem:[#allocation8 + $0xc] sm:$0xf]
          %v705 = vld [vmem:[#allocation8 + $0x10] sm:$0xf]
          %v706 = vld [vmem:[#allocation8 + $0x14] sm:$0xf]
          %v707 = vld [vmem:[#allocation8 + $0x18] sm:$0xf]
          %v708 = vld [vmem:[#allocation8 + $0x1c] sm:$0xf]
          %v709 = vld [vmem:[#allocation8 + $0x20] sm:$0xf]
          %v710 = vld [vmem:[#allocation8 + $0x24] sm:$0xf]
          %v711 = vld [vmem:[#allocation8 + $0x28] sm:$0xf]
          %v712 = vld [vmem:[#allocation8 + $0x2c] sm:$0xf]
          %v713 = vld [vmem:[#allocation8 + $0x30] sm:$0xf]
          %v714 = vld [vmem:[#allocation8 + $0x34] sm:$0xf]
          %v715 = vld [vmem:[#allocation8 + $0x38] sm:$0xf]
          %v716 = vld [vmem:[#allocation8 + $0x3c] sm:$0xf]
          %v717 = vld [vmem:[%s4] sm:$0x1]
          %v719 = vlaneseq
          %v720 = vshrl.u32 %v719, 7
          %v721 = vsub.s32 0, %v720
          %v722 = vrot.slane %v717, %v721
          %v740 = vunpack.c.l.b16 %v701
          %v741 = vunpack.c.l.b16 %v702
          %v742 = vunpack.c.l.b16 %v703
          %v743 = vunpack.c.l.b16 %v704
          %v744 = vunpack.c.l.b16 %v705
          %v745 = vunpack.c.l.b16 %v706
          %v746 = vunpack.c.l.b16 %v707
          %v747 = vunpack.c.l.b16 %v708
          %v748 = vunpack.c.l.b16 %v709
          %v749 = vunpack.c.l.b16 %v710
          %v750 = vunpack.c.l.b16 %v711
          %v751 = vunpack.c.l.b16 %v712
          %v752 = vunpack.c.l.b16 %v713
          %v753 = vunpack.c.l.b16 %v714
          %v754 = vunpack.c.l.b16 %v715
          %v755 = vunpack.c.l.b16 %v716
          %v756 = vpack.c.b16 %v741, %v740
          %v757 = vpack.c.b16 %v743, %v742
          %v758 = vpack.c.b16 %v745, %v744
          %v759 = vpack.c.b16 %v747, %v746
          %v760 = vpack.c.b16 %v749, %v748
          %v761 = vpack.c.b16 %v751, %v750
          %v762 = vpack.c.b16 %v753, %v752
          %v763 = vpack.c.b16 %v755, %v754
          %772 = vmatprep.subr.bf16.mxu0 0
          %773 = vmatpush1.bf16.msra.mxu0 %v763
          %774 = vmatprep.subr.bf16.mxu0 0
          %775 = vmatpush1.bf16.msra.mxu0 %v762
          %776 = vmatprep.subr.bf16.mxu0 0
          %777 = vmatpush1.bf16.msra.mxu0 %v761
          %778 = vmatprep.subr.bf16.mxu0 0
          %779 = vmatpush1.bf16.msra.mxu0 %v760
          %780 = vmatprep.subr.bf16.mxu0 0
          %781 = vmatpush1.bf16.msra.mxu0 %v759
          %782 = vmatprep.subr.bf16.mxu0 0
          %783 = vmatpush1.bf16.msra.mxu0 %v758
          %784 = vmatprep.subr.bf16.mxu0 0
          %785 = vmatpush1.bf16.msra.mxu0 %v757
          %786 = vmatprep.subr.bf16.mxu0 0
          %787 = vmatpush1.bf16.msra.mxu0 %v756
          %788 = vmatprep.subr.bf16.mxu0 0
          %789 = vmatpush2.bf16.msra.mxu0 0
          %790 = vmatprep.subr.bf16.mxu0 0
          %791 = vmatpush2.bf16.msra.mxu0 0
          %792 = vmatprep.subr.bf16.mxu0 0
          %793 = vmatpush2.bf16.msra.mxu0 0
          %794 = vmatprep.subr.bf16.mxu0 0
          %795 = vmatpush2.bf16.msra.mxu0 0
          %796 = vmatprep.subr.bf16.mxu0 0
          %797 = vmatpush2.bf16.msra.mxu0 0
          %798 = vmatprep.subr.bf16.mxu0 0
          %799 = vmatpush2.bf16.msra.mxu0 0
          %800 = vmatprep.subr.bf16.mxu0 0
          %801 = vmatpush2.bf16.msra.mxu0 0
          %802 = vmatprep.subr.bf16.mxu0 0
          %803 = vmatpush2.bf16.msra.mxu0 0
          %804 = vmatprep.mubr.bf16.mxu0 0
          %805 = vmatmul.mubr.bf16.gmra.mxu0 %v700
          %v806 = vpop.f32.mrf.mxu0
          %v807 = vadd.f32 %v722, %v806
          %v808 = vpop.f32.mrf.mxu0
          %v809 = vpop.f32.mrf.mxu0
          %v810 = vpop.f32.mrf.mxu0
          %811 = vdwg.mxu0
          %812 = vst [vmem:[#allocation10] sm:$0x3] %v807
        $region60: #{tpu_custom_call.1} parent=39 // pred_fallthru
          _
        // Predicated region
        $region61: #{tpu_custom_call.1} parent=39 // pred_check
          %p813 = pneg %p154
        $region62: #{tpu_custom_call.1} parent=39 // pred_check_branch
          %815 = sbr.rel (%p813) target = $region64
        $region63: #{tpu_custom_call.1} parent=39 // pred_region
          %s817 = ssub.s32 32, 32
          %818 = vsyncadd [#allocation5], %s817
          %s820 = sshll.u32 [#allocation9], 4
          %s821 = int_to_ptr.vmem [resolvable:$true] %s820
          %823 = dma.vmem_to_hbm [thread:$0]  %s821, 32, %s5, [#allocation5]
        $region64: #{tpu_custom_call.1} parent=39 // pred_fallthru
          _
        // Predicated region
        $region65: #{tpu_custom_call.1} parent=39 // pred_check
          %p824 = pneg %p175
        $region66: #{tpu_custom_call.1} parent=39 // pred_check_branch
          %826 = sbr.rel (%p824) target = $region68
        $region67: #{tpu_custom_call.1} parent=39 // pred_region
          %s828 = ssub.s32 32, 32
          %829 = vsyncadd [#allocation11], %s828
          %s831 = sshll.u32 [#allocation10], 4
          %s832 = int_to_ptr.vmem [resolvable:$true] %s831
          %834 = dma.vmem_to_hbm [thread:$0]  %s832, 32, %s6, [#allocation11]
        $region68: #{tpu_custom_call.1} parent=39 // pred_fallthru
          _
        // Predicated region
        $region69: #{tpu_custom_call.1} parent=39 // pred_check
          %p835 = pneg %p154
        $region70: #{tpu_custom_call.1} parent=39 // pred_check_branch
          %837 = sbr.rel (%p835) target = $region72
        $region71: #{tpu_custom_call.1} parent=39 // pred_region
          %838 = dma.done [#allocation5], 32
        $region72: #{tpu_custom_call.1} parent=39 // pred_fallthru
          _
        // Predicated region
        $region73: #{tpu_custom_call.1} parent=39 // pred_check
          %p839 = pneg %p175
        $region74: #{tpu_custom_call.1} parent=39 // pred_check_branch
          %841 = sbr.rel (%p839) target = $region76
        $region75: #{tpu_custom_call.1} parent=39 // pred_region
          %842 = dma.done [#allocation11], 32
        $region76: #{tpu_custom_call.1} parent=39 // pred_fallthru
          _
      $region40: #{tpu_custom_call.1} parent=5 // pred_fallthru
        _
      %p843 = scmp.le.s32.totalorder 2, %s21
      // Predicated region
      $region77: #{tpu_custom_call.1} parent=5 // pred_check
        %p844 = pneg %p843
      $region78: #{tpu_custom_call.1} parent=5 // pred_check_branch
        %846 = sbr.rel (%p844) target = $region80
      $region79: #{tpu_custom_call.1} parent=5 // pred_region
        %s847 = ssub.s32 %s21, 2
      $region80: #{tpu_custom_call.1} parent=5 // pred_fallthru
        _
    $region6: #{tpu_custom_call.1} parent=1 // loop_footer
      %s25 = sadd.s32 1, %s21
    $region7: #{tpu_custom_call.1} parent=1 // loop_footer_branch
      %20 = sbr.rel target = $region3
    $region8: #{tpu_custom_call.1} parent=1 // loop_exit
      _
    %848 = vsyncpa [#allocation4], 1
    %s849 = scalar_lea.sflag [#allocation4], 1
    %850 = vsyncpa %s849, 1
    %851 = vsyncpa [#allocation7], 1
    %s852 = scalar_lea.sflag [#allocation7], 1
    %853 = vsyncpa %s852, 1
    %854 = vsyncpa [#allocation5], 1
    %s855 = scalar_lea.sflag [#allocation5], 1
    %856 = vsyncpa %s855, 1
    %857 = vsyncpa [#allocation11], 1

</llo_original>
